<compile_context>
chip_gen: v5e
topology: v5e:2x2
jax: 0.10.0
libtpu: 0.0.40
codegen_flags: <defaults>
</compile_context>

<pallas_src>
import jax
import jax.numpy as jnp
from jax.experimental import pallas as pl
from jax.experimental.pallas import tpu as pltpu  # noqa: F401  (TPU backend)


def _sigmoid_params_kernel(p_ref, o_ref):
    # p_ref: (1, P) raw (pre-activation) control params in VMEM
    # o_ref: (1, P) sigmoid(control_params) in VMEM  (single vreg in / out)
    p = p_ref[...]
    o_ref[...] = 1.0 / (1.0 + jnp.exp(-p))  # exp -> EUP; exact fp32 sigmoid


def static_controller_forward(x: jax.Array, control_params: jax.Array) -> jax.Array:
    """x: (bs, chs, seq_len); control_params: (P,). Returns (bs, P, 1) float32."""
    bs = x.shape[0]
    P = control_params.shape[0]
    p2d = control_params.reshape(1, P).astype(jnp.float32)

    # Block == full array (1, P), so the (8,128) divisibility rule does not
    # apply; one masked vst of one vreg is the entire store traffic.
    s2d = pl.pallas_call(
        _sigmoid_params_kernel,
        out_shape=jax.ShapeDtypeStruct((1, P), jnp.float32),
        in_specs=[pl.BlockSpec((1, P), lambda: (0, 0))],
        out_specs=pl.BlockSpec((1, P), lambda: (0, 0)),
        # Tell XLA this custom call is ~free so it doesn't schedule around it
        # conservatively (review item #2).
        cost_estimate=pl.CostEstimate(
            flops=2 * P, transcendentals=P, bytes_accessed=8 * P
        ),
    )(p2d)

    # bs-repeat + trailing unsqueeze as a broadcast view (pure glue): XLA fuses
    # this into the downstream consumer instead of materializing (bs, P, 1).
    return jnp.broadcast_to(s2d.reshape(1, P, 1), (bs, P, 1))


if __name__ == "__main__":
    key = jax.random.PRNGKey(0)
    k_param, k_x = jax.random.split(key)

    bs, chs, seq_len = 2, 4, 16
    num_control_params = 8

    # control_params_initial == 'rnd'  ->  randn(num_control_params)
    control_params = jax.random.normal(k_param, (num_control_params,), dtype=jnp.float32)
    x = jax.random.normal(k_x, (bs, chs, seq_len), dtype=jnp.float32)

    out = static_controller_forward(x, control_params)
    out = jax.block_until_ready(out)

    # reference check (plain JAX)
    ref = jnp.broadcast_to(
        jax.nn.sigmoid(control_params)[None, :, None], (bs, num_control_params, 1)
    )
    assert out.shape == (bs, num_control_params, 1)
    assert out.dtype == jnp.float32
    assert jnp.allclose(out, ref, atol=1e-6), "mismatch vs reference"

    print("KERNEL_OK")
</pallas_src>

<mosaic_0001>
module attributes {stable_mosaic.version = 11 : i64} {
  func.func @_sigmoid_params_kernel(%arg0: memref<1x8xf32, #tpu.memory_space<vmem>>, %arg1: memref<1x8xf32, #tpu.memory_space<vmem>>) attributes {dimension_semantics = [], scalar_prefetch = 0 : i64, scratch_operands = 0 : i64, tpu.core_type = #tpu.core_type<tc>} {
    %c0 = arith.constant 0 : index
    %c0_0 = arith.constant 0 : index
    %0 = vector.load %arg0[%c0, %c0_0] : memref<1x8xf32, #tpu.memory_space<vmem>>, vector<1x8xf32>
    %cst = arith.constant 0.000000e+00 : f32
    %1 = vector.broadcast %cst : f32 to vector<1x8xf32>
    %2 = arith.subf %1, %0 : vector<1x8xf32>
    %3 = math.exp %2 : vector<1x8xf32>
    %cst_1 = arith.constant 1.000000e+00 : f32
    %4 = vector.broadcast %cst_1 : f32 to vector<1x8xf32>
    %5 = arith.addf %4, %3 : vector<1x8xf32>
    %cst_2 = arith.constant 1.000000e+00 : f32
    %6 = vector.broadcast %cst_2 : f32 to vector<1x8xf32>
    %7 = arith.divf %6, %5 : vector<1x8xf32>
    %c0_3 = arith.constant 0 : index
    %c0_4 = arith.constant 0 : index
    %8 = vector.load %arg1[%c0_3, %c0_4] : memref<1x8xf32, #tpu.memory_space<vmem>>, vector<1x8xf32>
    tpu.vector_store %arg1[%c0_3, %c0_4], %7 {strides = array<i32>} : memref<1x8xf32, #tpu.memory_space<vmem>>, vector<1x8xf32>,
    return
  }
}

</mosaic_0001>

<llo_original>
// kernel: tpu_custom_call.1
$region0: #{tpu_custom_call.1}
  #allocation0 [shape = 'u32[]', space=smem, size = 0x4, offset = 0x4, fixed_abs, tag = 'smem constant byte address 0x4 - core index']
  #allocation1 [shape = 'u32[72,128]{1,0:T(1,128)}', space=vmem, size = 0x9000, scoped, tag = 'internal scratch']
  %s0 = inlined_call_operand.hbm [shape: f32[1,8], index: 0, kind: input, shape index: {}]
  %s1 = inlined_call_operand.hbm [shape: f32[1,8], index: 1, kind: output, shape index: {}]
  %s2 = sld [smem:[#allocation0]]
  $region18: #{tpu_custom_call.1} parent=0
    _
  %s4 = ssub.s32 1, %s2
  %s5 = scalar_select 0, %s4, %s2
  $region1: #{tpu_custom_call.1} parent=0
    #allocation2 [shape = 'u8[512]{0}', space=vmem, size = 0x400, scoped, tag = 'input window, operand 0, single buffered']
    #allocation3 [shape = 's32[1]{0}', space=sflag, size = 0x4, scoped, tag = 'scoped memory for tpu_custom_call.1']
    #allocation4 [shape = 's32[1]{0}', space=sflag, size = 0x4, scoped, tag = 'scoped memory for tpu_custom_call.1']
    #allocation5 [shape = 'u8[512]{0}', space=vmem, size = 0x400, scoped, tag = 'output window, operand 0, single buffered']
    %6 = vsyncpa [#allocation3], 0
    %7 = vsyncpa [#allocation4], 0
    // Predicated region
    $region2: #{tpu_custom_call.1} parent=1 // pred_check
      _
    $region3: #{tpu_custom_call.1} parent=1 // pred_check_branch
      %9 = sbr.rel (0) target = $region5
    $region4: #{tpu_custom_call.1} parent=1 // pred_region
      %11 = vsyncadd [#allocation3], 0
      %s13 = sshll.u32 %s0, 4
      %s14 = int_to_ptr.hbm [resolvable:$true] %s13
      %s15 = sshll.u32 [#allocation2], 4
      %s16 = int_to_ptr.vmem [resolvable:$true] %s15
      %18 = dma.hbm_to_vmem [thread:$0]  %s14, 16, %s16, [#allocation3]
    $region5: #{tpu_custom_call.1} parent=1 // pred_fallthru
      _
    // Predicated region
    $region6: #{tpu_custom_call.1} parent=1 // pred_check
      _
    $region7: #{tpu_custom_call.1} parent=1 // pred_check_branch
      %20 = sbr.rel (0) target = $region9
    $region8: #{tpu_custom_call.1} parent=1 // pred_region
      %22 = dma.done [#allocation3], 16
    $region9: #{tpu_custom_call.1} parent=1 // pred_fallthru
      _
    %v23 = vld [vmem:[#allocation2] sm:$0x1]
    %v24 = vsub.f32 0.0, %v23
    %v25 = vmul.f32 %v24, 1.442695
    %v26 = vpow.pop %v25
    %v27 = vadd.f32 %v26, 1.0
    %v28 = vrcp.pop %v27
    %v29 = vmul.f32 %v27, %v28
    %v30 = vsub.f32 1.0, %v29
    %v31 = vmul.f32 %v28, %v30
    %v32 = vadd.f32 %v28, %v31
    %vm33 = vweird.f32 %v27
    %vm34 = vweird.f32 %v28
    %vm35 = vmor %vm33, %vm34
    %v36 = vsel %vm35, %v28, %v32
    %v37 = vand.u32 2147483647, %v27
    %vm38 = vcmp.eq.f32.partialorder %v37, 8.507059e+37
    %v39 = vand.u32 %v27, 2147483648
    %v40 = vor.u32 1.1754944e-38, %v39
    %v41 = vsel %vm38, %v40, %v36
    %v42 = vmul.f32 1.0, %v41
    %vm43 = vcmask 57344
    %44 = vst.msk [vmem:[#allocation5] sm:$0x1] %vm43, %v42
    // Predicated region
    $region10: #{tpu_custom_call.1} parent=1 // pred_check
      _
    $region11: #{tpu_custom_call.1} parent=1 // pred_check_branch
      %46 = sbr.rel (0) target = $region13
    $region12: #{tpu_custom_call.1} parent=1 // pred_region
      %48 = vsyncadd [#allocation4], 0
      %s50 = sshll.u32 [#allocation5], 4
      %s51 = int_to_ptr.vmem [resolvable:$true] %s50
      %s52 = sshll.u32 %s1, 4
      %s53 = int_to_ptr.hbm [resolvable:$true] %s52
      %55 = dma.vmem_to_hbm [thread:$0]  %s51, 16, %s53, [#allocation4]
    $region13: #{tpu_custom_call.1} parent=1 // pred_fallthru
      _
    // Predicated region
    $region14: #{tpu_custom_call.1} parent=1 // pred_check
      _
    $region15: #{tpu_custom_call.1} parent=1 // pred_check_branch
      %57 = sbr.rel (0) target = $region17
    $region16: #{tpu_custom_call.1} parent=1 // pred_region
      %59 = dma.done [#allocation4], 16
    $region17: #{tpu_custom_call.1} parent=1 // pred_fallthru
      _
    %60 = vsyncpa [#allocation3], 1
    %61 = vsyncpa [#allocation4], 1

</llo_original>
